<compile_context>
chip_gen: v7x
topology: tpu7x:2x2x1
jax: 0.10.0
libtpu: 0.0.40
codegen_flags: <defaults>
</compile_context>

<pallas_src>
import functools

import jax
import jax.numpy as jnp
from jax.experimental import pallas as pl
from jax.experimental.pallas import tpu as pltpu


# ---------------------------------------------------------------------------
# Kernels
# ---------------------------------------------------------------------------
def _excite(s_pool, w1_ref, b1_ref, w2_ref, b2_ref):
    """FC -> SiLU -> FC -> Sigmoid on a (Bt, C) f32 pooled tensor."""
    w1 = w1_ref[...].astype(jnp.float32)                  # (Cmid, C)
    w2 = w2_ref[...].astype(jnp.float32)                  # (C, Cmid)
    h = jax.lax.dot_general(s_pool, w1, (((1,), (1,)), ((), ())),
                            preferred_element_type=jnp.float32) + b1_ref[...]
    h = h * jax.nn.sigmoid(h)                             # SiLU
    g = jax.lax.dot_general(h, w2, (((1,), (1,)), ((), ())),
                            preferred_element_type=jnp.float32) + b2_ref[...]
    return jax.nn.sigmoid(g)                              # (Bt, C) f32


def se_fused_kernel(x_ref, w1_ref, b1_ref, w2_ref, b2_ref, o_ref, *, inv_hw):
    # x_ref block: (Bt, C, HW) -- full spatial extent on lanes.
    # Squeeze: f32-accumulated mean over the lane axis (no f32 x temporary).
    s_pool = jnp.sum(x_ref[...], axis=-1, dtype=jnp.float32) * inv_hw  # (Bt, C)
    g = _excite(s_pool, w1_ref, b1_ref, w2_ref, b2_ref)                # (Bt, C)
    # Scale in the native dtype; broadcast the gate over the spatial axis.
    o_ref[...] = (x_ref[...] * g.astype(o_ref.dtype)[:, :, None]).astype(o_ref.dtype)


def se_pool_gate_kernel(x_ref, w1_ref, b1_ref, w2_ref, b2_ref, g_ref, acc_ref,
                        *, inv_hw, hw, ts):
    # Large-image pass 1: grid = (batch, spatial_chunks); accumulate the sum.
    s_idx = pl.program_id(1)

    @pl.when(s_idx == 0)
    def _():
        acc_ref[...] = jnp.zeros_like(acc_ref)

    x = x_ref[...]                                        # (Bt, C, Ts)
    if hw % ts != 0:
        # Ragged last chunk: zero out lanes beyond the true spatial extent so
        # garbage in the clipped DMA region cannot perturb the pooled sum.
        col = jax.lax.broadcasted_iota(jnp.int32, x.shape, 2) + s_idx * ts
        x = jnp.where(col < hw, x, jnp.zeros_like(x))
    acc_ref[...] += jnp.sum(x, axis=-1, dtype=jnp.float32)

    @pl.when(s_idx == pl.num_programs(1) - 1)
    def _():
        g = _excite(acc_ref[...] * inv_hw, w1_ref, b1_ref, w2_ref, b2_ref)
        g_ref[...] = g[:, :, None]                        # (Bt, C, 1) f32


def se_scale_kernel(x_ref, g_ref, o_ref):
    # Large-image pass 2: out = x * g, streamed over spatial chunks.
    g = g_ref[...].astype(o_ref.dtype)                    # (Bt, C, 1)
    o_ref[...] = (x_ref[...] * g).astype(o_ref.dtype)


# ---------------------------------------------------------------------------
# Generation-aware tiling
# ---------------------------------------------------------------------------
def _vmem_capacity_bytes():
    try:
        info = pltpu.get_tpu_info()
        cap = getattr(info, "vmem_capacity_bytes", None)
        if cap:
            return int(cap)
    except Exception:
        pass
    return 64 << 20  # conservative fallback: v7x per-TensorCore VMEM


def _tiling_params():
    cap = _vmem_capacity_bytes()
    if cap <= (96 << 20):
        # v7x-class: 64 MiB VMEM per TC, batch axis is shared by 2 TCs ->
        # small tiles, limit well under the scoped default, even grid length.
        return dict(tile_budget=4 << 20, vmem_limit=48 << 20,
                    min_grid=4, even_grid=True)
    # v5e / v6e: 128 MiB VMEM, single TC -> bigger tiles amortize the
    # ~0.35 us per-grid-step overhead; keep a handful of steps for pipelining.
    return dict(tile_budget=8 << 20, vmem_limit=64 << 20,
                min_grid=4, even_grid=False)


def _pick_batch_tile(B, bytes_per_image, tile_budget, min_grid, even_grid):
    """Largest Bt whose (Bt, C, HW) tile fits the budget; non-divisor Bt is
    allowed (ragged tail handled by Pallas). Keeps grid >= min_grid when the
    batch allows it, and an even grid on megacore parts."""
    bt = max(1, min(B, tile_budget // max(1, bytes_per_image)))
    if B >= min_grid:
        bt = min(bt, max(1, B // min_grid))
    if even_grid and B > 1:
        while bt > 1 and pl.cdiv(B, bt) % 2 != 0:
            bt -= 1
    return bt


# ---------------------------------------------------------------------------
# Wrapper
# ---------------------------------------------------------------------------
def se_forward(x, w1, b1, w2, b2, *, donate_x=False, max_tile_bytes=None):
    """x: (B, C, H, W) f32 or bf16. w1: (Cmid, C), w2: (C, Cmid). Returns (B, C, H, W)."""
    B, C, H, W = x.shape
    HW = H * W
    Cmid = w1.shape[0]
    itemsize = jnp.dtype(x.dtype).itemsize

    params = _tiling_params()
    tile_budget = int(max_tile_bytes) if max_tile_bytes is not None else params["tile_budget"]
    vmem_limit = params["vmem_limit"]

    x_flat = x.reshape(B, C, HW)            # collapses trailing dims: no HBM pass
    b1r = b1.reshape(1, Cmid).astype(jnp.float32)
    b2r = b2.reshape(1, C).astype(jnp.float32)
    inv_hw = 1.0 / HW
    bytes_per_image = C * HW * itemsize

    if bytes_per_image <= tile_budget:
        # ---- fused single-pass path: one read + one write of x ----
        Bt = _pick_batch_tile(B, bytes_per_image, tile_budget,
                              params["min_grid"], params["even_grid"])
        grid = (pl.cdiv(B, Bt),)
        out_flat = pl.pallas_call(
            functools.partial(se_fused_kernel, inv_hw=inv_hw),
            out_shape=jax.ShapeDtypeStruct((B, C, HW), x.dtype),
            grid_spec=pltpu.PrefetchScalarGridSpec(
                num_scalar_prefetch=0,
                grid=grid,
                in_specs=[
                    pl.BlockSpec((Bt, C, HW), lambda b: (b, 0, 0)),
                    pl.BlockSpec((Cmid, C), lambda b: (0, 0)),
                    pl.BlockSpec((1, Cmid), lambda b: (0, 0)),
                    pl.BlockSpec((C, Cmid), lambda b: (0, 0)),
                    pl.BlockSpec((1, C), lambda b: (0, 0)),
                ],
                out_specs=pl.BlockSpec((Bt, C, HW), lambda b: (b, 0, 0)),
            ),
            compiler_params=pltpu.CompilerParams(
                dimension_semantics=("parallel",),
                vmem_limit_bytes=vmem_limit,
            ),
            input_output_aliases=({0: 0} if donate_x else {}),
        )(x_flat, w1, b1r, w2, b2r)
        return out_flat.reshape(B, C, H, W)

    # ---- two-pass path for images larger than the per-tile budget ----
    Bt = 1
    Ts = max(128, (tile_budget // max(1, C * itemsize)) // 128 * 128)
    Ts = min(Ts, pl.cdiv(HW, 128) * 128)
    ns = pl.cdiv(HW, Ts)
    grid2 = (pl.cdiv(B, Bt), ns)

    gate = pl.pallas_call(
        functools.partial(se_pool_gate_kernel, inv_hw=inv_hw, hw=HW, ts=Ts),
        out_shape=jax.ShapeDtypeStruct((B, C, 1), jnp.float32),
        grid_spec=pltpu.PrefetchScalarGridSpec(
            num_scalar_prefetch=0,
            grid=grid2,
            in_specs=[
                pl.BlockSpec((Bt, C, Ts), lambda b, s: (b, 0, s)),
                pl.BlockSpec((Cmid, C), lambda b, s: (0, 0)),
                pl.BlockSpec((1, Cmid), lambda b, s: (0, 0)),
                pl.BlockSpec((C, Cmid), lambda b, s: (0, 0)),
                pl.BlockSpec((1, C), lambda b, s: (0, 0)),
            ],
            out_specs=pl.BlockSpec((Bt, C, 1), lambda b, s: (b, 0, 0)),
            scratch_shapes=[pltpu.VMEM((Bt, C), jnp.float32)],
        ),
        compiler_params=pltpu.CompilerParams(
            dimension_semantics=("parallel", "arbitrary"),
            vmem_limit_bytes=vmem_limit,
        ),
    )(x_flat, w1, b1r, w2, b2r)

    out_flat = pl.pallas_call(
        se_scale_kernel,
        out_shape=jax.ShapeDtypeStruct((B, C, HW), x.dtype),
        grid_spec=pltpu.PrefetchScalarGridSpec(
            num_scalar_prefetch=0,
            grid=grid2,
            in_specs=[
                pl.BlockSpec((Bt, C, Ts), lambda b, s: (b, 0, s)),
                pl.BlockSpec((Bt, C, 1), lambda b, s: (b, 0, 0)),
            ],
            out_specs=pl.BlockSpec((Bt, C, Ts), lambda b, s: (b, 0, s)),
        ),
        compiler_params=pltpu.CompilerParams(
            dimension_semantics=("parallel", "parallel"),
            vmem_limit_bytes=vmem_limit,
        ),
        input_output_aliases=({0: 0} if donate_x else {}),
    )(x_flat, gate)
    return out_flat.reshape(B, C, H, W)


# ---------------------------------------------------------------------------
# Plain-JAX reference (matches the PyTorch forward)
# ---------------------------------------------------------------------------
def se_reference(x, w1, b1, w2, b2):
    xf = x.astype(jnp.float32)
    s = jnp.mean(xf, axis=(2, 3))                          # (B, C)
    h = s @ w1.T + b1                                      # (B, Cmid)
    h = h * jax.nn.sigmoid(h)                              # SiLU
    g = jax.nn.sigmoid(h @ w2.T + b2)                      # (B, C)
    return (xf * g[:, :, None, None]).astype(x.dtype)


if __name__ == "__main__":
    # Module config: SE(ch=32, r=1) -> hidden = ch // (4*r) = 8
    B, C, H, W = 2, 32, 16, 16
    r = 1
    Cmid = C // (4 * r)

    key = jax.random.PRNGKey(0)
    kx, k1, k2, k3, k4 = jax.random.split(key, 5)

    x = jax.random.normal(kx, (B, C, H, W), dtype=jnp.float32)
    # Conv2d(C, Cmid, 1) weight (Cmid, C, 1, 1) -> squeeze to (Cmid, C)
    w1 = jax.random.normal(k1, (Cmid, C), dtype=jnp.float32) * 0.1
    b1 = jax.random.normal(k2, (Cmid,), dtype=jnp.float32) * 0.1
    # Conv2d(Cmid, C, 1) weight (C, Cmid, 1, 1) -> squeeze to (C, Cmid)
    w2 = jax.random.normal(k3, (C, Cmid), dtype=jnp.float32) * 0.1
    b2 = jax.random.normal(k4, (C,), dtype=jnp.float32) * 0.1

    # Fused single-pass path (no pad/slice, full-extent spatial block).
    out = jax.block_until_ready(se_forward(x, w1, b1, w2, b2))
    ref = se_reference(x, w1, b1, w2, b2)
    assert out.shape == (B, C, H, W)
    assert jnp.allclose(out, ref, atol=1e-5, rtol=1e-5), "fused path mismatch"

    # Two-pass (spatially chunked) large-image path, forced via a tiny tile
    # budget, with a ragged (non multiple-of-128) spatial extent.
    x2 = jax.random.normal(kx, (2, C, 20, 20), dtype=jnp.float32)
    out2 = jax.block_until_ready(
        se_forward(x2, w1, b1, w2, b2, max_tile_bytes=8 * 1024))
    ref2 = se_reference(x2, w1, b1, w2, b2)
    assert out2.shape == x2.shape
    assert jnp.allclose(out2, ref2, atol=1e-5, rtol=1e-5), "chunked path mismatch"

    print("KERNEL_OK")
</pallas_src>

<mosaic_0001>
module attributes {stable_mosaic.version = 11 : i64} {
  func.func @se_fused_kernel(%arg0: i32, %arg1: memref<1x32x256xf32, #tpu.memory_space<vmem>>, %arg2: memref<8x32xf32, #tpu.memory_space<vmem>>, %arg3: memref<1x8xf32, #tpu.memory_space<vmem>>, %arg4: memref<32x8xf32, #tpu.memory_space<vmem>>, %arg5: memref<1x32xf32, #tpu.memory_space<vmem>>, %arg6: memref<1x32x256xf32, #tpu.memory_space<vmem>>) attributes {dimension_semantics = [#tpu.dimension_semantics<parallel>], iteration_bounds = array<i64: 2>, scalar_prefetch = 0 : i64, scratch_operands = 0 : i64, tpu.core_type = #tpu.core_type<tc>, window_params = [{transform_indices = @transform_0, window_bounds = array<i64: 1, 32, 256>}, {pipeline_mode = #tpu.pipeline_mode<synchronous>, transform_indices = @transform_1, window_bounds = array<i64: 8, 32>}, {pipeline_mode = #tpu.pipeline_mode<synchronous>, transform_indices = @transform_2, window_bounds = array<i64: 1, 8>}, {pipeline_mode = #tpu.pipeline_mode<synchronous>, transform_indices = @transform_3, window_bounds = array<i64: 32, 8>}, {pipeline_mode = #tpu.pipeline_mode<synchronous>, transform_indices = @transform_4, window_bounds = array<i64: 1, 32>}, {transform_indices = @transform_5, window_bounds = array<i64: 1, 32, 256>}]} {
    %c0 = arith.constant 0 : index
    %c0_0 = arith.constant 0 : index
    %c0_1 = arith.constant 0 : index
    %0 = vector.load %arg1[%c0, %c0_0, %c0_1] : memref<1x32x256xf32, #tpu.memory_space<vmem>>, vector<1x32x256xf32>
    %cst = arith.constant dense<0.000000e+00> : vector<1x32xf32>
    %1 = vector.multi_reduction <add>, %0, %cst [2] : vector<1x32x256xf32> to vector<1x32xf32>
    %cst_2 = arith.constant 3.906250e-03 : f32
    %2 = vector.broadcast %cst_2 : f32 to vector<1x32xf32>
    %3 = arith.mulf %1, %2 : vector<1x32xf32>
    %c0_3 = arith.constant 0 : index
    %c0_4 = arith.constant 0 : index
    %4 = vector.load %arg2[%c0_3, %c0_4] : memref<8x32xf32, #tpu.memory_space<vmem>>, vector<8x32xf32>
    %c0_5 = arith.constant 0 : index
    %c0_6 = arith.constant 0 : index
    %5 = vector.load %arg4[%c0_5, %c0_6] : memref<32x8xf32, #tpu.memory_space<vmem>>, vector<32x8xf32>
    %cst_7 = arith.constant dense<0.000000e+00> : vector<1x8xf32>
    %6 = tpu.matmul %3, %4, %cst_7 {dimension_numbers = #tpu.dot_dimension_numbers<[1], [1], [0], [0], [0, 0, 1, 0], [], []>} : vector<1x32xf32>, vector<8x32xf32>, vector<1x8xf32> -> vector<1x8xf32>
    %c0_8 = arith.constant 0 : index
    %c0_9 = arith.constant 0 : index
    %7 = vector.load %arg3[%c0_8, %c0_9] : memref<1x8xf32, #tpu.memory_space<vmem>>, vector<1x8xf32>
    %8 = arith.addf %6, %7 : vector<1x8xf32>
    %9 = arith.negf %8 : vector<1x8xf32>
    %10 = math.exp %9 : vector<1x8xf32>
    %cst_10 = arith.constant 1.000000e+00 : f32
    %11 = vector.broadcast %cst_10 : f32 to vector<1x8xf32>
    %12 = arith.addf %11, %10 : vector<1x8xf32>
    %13 = arith.divf %11, %12 : vector<1x8xf32>
    %14 = arith.mulf %8, %13 : vector<1x8xf32>
    %cst_11 = arith.constant dense<0.000000e+00> : vector<1x32xf32>
    %15 = tpu.matmul %14, %5, %cst_11 {dimension_numbers = #tpu.dot_dimension_numbers<[1], [1], [0], [0], [0, 0, 1, 0], [], []>} : vector<1x8xf32>, vector<32x8xf32>, vector<1x32xf32> -> vector<1x32xf32>
    %c0_12 = arith.constant 0 : index
    %c0_13 = arith.constant 0 : index
    %16 = vector.load %arg5[%c0_12, %c0_13] : memref<1x32xf32, #tpu.memory_space<vmem>>, vector<1x32xf32>
    %17 = arith.addf %15, %16 : vector<1x32xf32>
    %18 = arith.negf %17 : vector<1x32xf32>
    %19 = math.exp %18 : vector<1x32xf32>
    %cst_14 = arith.constant 1.000000e+00 : f32
    %20 = vector.broadcast %cst_14 : f32 to vector<1x32xf32>
    %21 = arith.addf %20, %19 : vector<1x32xf32>
    %22 = arith.divf %20, %21 : vector<1x32xf32>
    %c0_15 = arith.constant 0 : index
    %c0_16 = arith.constant 0 : index
    %c0_17 = arith.constant 0 : index
    %23 = vector.load %arg1[%c0_15, %c0_16, %c0_17] : memref<1x32x256xf32, #tpu.memory_space<vmem>>, vector<1x32x256xf32>
    %24 = vector.shape_cast %22 : vector<1x32xf32> to vector<1x32x1xf32>
    %25 = vector.broadcast %24 : vector<1x32x1xf32> to vector<1x32x256xf32>
    %26 = arith.mulf %23, %25 : vector<1x32x256xf32>
    %c0_18 = arith.constant 0 : index
    %c0_19 = arith.constant 0 : index
    %c0_20 = arith.constant 0 : index
    %27 = vector.load %arg6[%c0_18, %c0_19, %c0_20] : memref<1x32x256xf32, #tpu.memory_space<vmem>>, vector<1x32x256xf32>
    tpu.vector_store %arg6[%c0_18, %c0_19, %c0_20], %26 {strides = array<i32>} : memref<1x32x256xf32, #tpu.memory_space<vmem>>, vector<1x32x256xf32>,
    return
  }
  func.func @transform_0(%arg0: i32) -> (i32, i32, i32) {
    %c0_i32 = arith.constant 0 : i32
    %c0_i32_0 = arith.constant 0 : i32
    %c0_i32_1 = arith.constant 0 : i32
    return %arg0, %c0_i32, %c0_i32_0 : i32, i32, i32
  }
  func.func @transform_1(%arg0: i32) -> (i32, i32) {
    %c0_i32 = arith.constant 0 : i32
    %c0_i32_0 = arith.constant 0 : i32
    %c0_i32_1 = arith.constant 0 : i32
    return %c0_i32, %c0_i32_0 : i32, i32
  }
  func.func @transform_2(%arg0: i32) -> (i32, i32) {
    %c0_i32 = arith.constant 0 : i32
    %c0_i32_0 = arith.constant 0 : i32
    %c0_i32_1 = arith.constant 0 : i32
    return %c0_i32, %c0_i32_0 : i32, i32
  }
  func.func @transform_3(%arg0: i32) -> (i32, i32) {
    %c0_i32 = arith.constant 0 : i32
    %c0_i32_0 = arith.constant 0 : i32
    %c0_i32_1 = arith.constant 0 : i32
    return %c0_i32, %c0_i32_0 : i32, i32
  }
  func.func @transform_4(%arg0: i32) -> (i32, i32) {
    %c0_i32 = arith.constant 0 : i32
    %c0_i32_0 = arith.constant 0 : i32
    %c0_i32_1 = arith.constant 0 : i32
    return %c0_i32, %c0_i32_0 : i32, i32
  }
  func.func @transform_5(%arg0: i32) -> (i32, i32, i32) {
    %c0_i32 = arith.constant 0 : i32
    %c0_i32_0 = arith.constant 0 : i32
    %c0_i32_1 = arith.constant 0 : i32
    return %arg0, %c0_i32, %c0_i32_0 : i32, i32, i32
  }
}

</mosaic_0001>

<llo_original>
// kernel: tpu_custom_call.1
$region0: #{tpu_custom_call.1}
  #allocation0 [shape = 'u32[]', space=smem, size = 0x4, offset = 0x4, fixed_abs, tag = 'smem constant byte address 0x4 - core index']
  #allocation1 [shape = 'u32[144,128]{1,0:T(1,128)}', space=vmem, size = 0x12000, scoped, tag = 'internal scratch']
  %s0 = inlined_call_operand.hbm [shape: f32[2,32,256], index: 0, kind: input, shape index: {}]
  %s1 = inlined_call_operand.vmem [shape: f32[8,32], index: 1, kind: input, shape index: {}]
  %s2 = inlined_call_operand.vmem [shape: f32[1,8], index: 2, kind: input, shape index: {}]
  %s3 = inlined_call_operand.vmem [shape: f32[32,8], index: 3, kind: input, shape index: {}]
  %s4 = inlined_call_operand.vmem [shape: f32[1,32], index: 4, kind: input, shape index: {}]
  %s5 = inlined_call_operand.hbm [shape: f32[2,32,256], index: 5, kind: output, shape index: {}]
  %s6 = sld [smem:[#allocation0]]
  $region57: #{tpu_custom_call.1} parent=0
    _
  %s8 = ssub.s32 1, %s6
  %s9 = scalar_select 0, %s8, %s6
  $region1: #{tpu_custom_call.1} parent=0
    #allocation2 [shape = 'u8[65536]{0}', space=vmem, size = 0x10000, scoped, tag = 'input window, operand 0']
    #allocation3 [shape = 's32[2]{0}', space=sflag, size = 0x8, scoped, tag = 'scoped memory for tpu_custom_call.1']
    #allocation4 [shape = 's32[2]{0}', space=sflag, size = 0x8, scoped, tag = 'scoped memory for tpu_custom_call.1']
    #allocation5 [shape = 'u8[65536]{0}', space=vmem, size = 0x10000, scoped, tag = 'output window, operand 0']
    %10 = vsyncpa [#allocation3], 0
    %s11 = scalar_lea.sflag [#allocation3], 1
    %12 = vsyncpa %s11, 0
    %13 = vsyncpa [#allocation4], 0
    %s14 = scalar_lea.sflag [#allocation4], 1
    %15 = vsyncpa %s14, 0
    loop: start=0, step=1, limit=4
    $region2: #{tpu_custom_call.1} parent=1 // loop_pre_header
      _
    $region3: #{tpu_custom_call.1} parent=1 // loop_header
      %s17 = sphi 0, %s21
      %p18 = scmp.ge.s32.totalorder %s17, 4
      %s27 = sphi 0, %s29
      %s30 = sphi 0, %s27
      %s31 = sphi 0, %s30
      %s47 = sphi 0, %s31
      %s51 = sphi 0, %s51
      %s53 = sphi 0, %s51
      %s54 = sphi 0, %s53
      %s68 = sphi 0, %s54
      %s72 = sphi 0, %s72
      %s74 = sphi 0, %s72
      %s75 = sphi 0, %s74
      %s89 = sphi 0, %s75
      %s93 = sphi 0, %s93
      %s95 = sphi 0, %s93
      %s96 = sphi 0, %s95
      %s110 = sphi 0, %s96
      %s114 = sphi 0, %s114
      %s116 = sphi 0, %s114
      %s117 = sphi 0, %s116
      %s131 = sphi 0, %s117
      %s137 = sphi 0, %s139
      %s140 = sphi 0, %s137
      %s141 = sphi 0, %s140
      %s157 = sphi 0, %s141
    $region4: #{tpu_custom_call.1} parent=1 // loop_header_branch
      %20 = sbr.rel (%p18) target = $region8
    $region5: #{tpu_custom_call.1} parent=1 // loop_body
      %s22 = ssub.s32 %s17, 1
      %s23 = ssub.s32 %s17, 2
      %s24 = sadd.s32 %s17, 1
      %s25 = ssub.s32 %s17, %s24
      %p26 = scmp.eq.s32.totalorder %s25, 0
      %s28 = sadd.s32 %s27, 1
      %s29 = scalar_select %p26, %s27, %s28
      %p32 = pneg %p26
      %p33 = scmp.eq.s32.totalorder %s17, 1
      %p34 = por %p32, %p33
      %p35 = scmp.ne.s32.totalorder %s27, %s30
      %p36 = scmp.eq.s32.totalorder %s17, 0
      %p37 = por %p35, %p36
      %p38 = scmp.ne.s32.totalorder %s27, %s30
      %p39 = scmp.eq.s32.totalorder %s22, 1
      %p40 = por %p38, %p39
      %p41 = scmp.ne.s32.totalorder %s30, %s31
      %p42 = scmp.eq.s32.totalorder %s22, 0
      %p43 = por %p41, %p42
      %p44 = scmp.ne.s32.totalorder %s30, %s31
      %p45 = scmp.eq.s32.totalorder %s23, 1
      %p46 = por %p44, %p45
      %p48 = scmp.ne.s32.totalorder %s31, %s47
      %p49 = scmp.eq.s32.totalorder %s23, 0
      %p50 = por %p48, %p49
      %s52 = sadd.s32 %s51, 1
      %p55 = scmp.eq.s32.totalorder %s17, 1
      %p56 = scmp.ne.s32.totalorder %s51, %s53
      %p57 = scmp.eq.s32.totalorder %s17, 0
      %p58 = por %p56, %p57
      %p59 = scmp.ne.s32.totalorder %s51, %s53
      %p60 = scmp.eq.s32.totalorder %s22, 1
      %p61 = por %p59, %p60
      %p62 = scmp.ne.s32.totalorder %s53, %s54
      %p63 = scmp.eq.s32.totalorder %s22, 0
      %p64 = por %p62, %p63
      %p65 = scmp.ne.s32.totalorder %s53, %s54
      %p66 = scmp.eq.s32.totalorder %s23, 1
      %p67 = por %p65, %p66
      %p69 = scmp.ne.s32.totalorder %s54, %s68
      %p70 = scmp.eq.s32.totalorder %s23, 0
      %p71 = por %p69, %p70
      %s73 = sadd.s32 %s72, 1
      %p76 = scmp.eq.s32.totalorder %s17, 1
      %p77 = scmp.ne.s32.totalorder %s72, %s74
      %p78 = scmp.eq.s32.totalorder %s17, 0
      %p79 = por %p77, %p78
      %p80 = scmp.ne.s32.totalorder %s72, %s74
      %p81 = scmp.eq.s32.totalorder %s22, 1
      %p82 = por %p80, %p81
      %p83 = scmp.ne.s32.totalorder %s74, %s75
      %p84 = scmp.eq.s32.totalorder %s22, 0
      %p85 = por %p83, %p84
      %p86 = scmp.ne.s32.totalorder %s74, %s75
      %p87 = scmp.eq.s32.totalorder %s23, 1
      %p88 = por %p86, %p87
      %p90 = scmp.ne.s32.totalorder %s75, %s89
      %p91 = scmp.eq.s32.totalorder %s23, 0
      %p92 = por %p90, %p91
      %s94 = sadd.s32 %s93, 1
      %p97 = scmp.eq.s32.totalorder %s17, 1
      %p98 = scmp.ne.s32.totalorder %s93, %s95
      %p99 = scmp.eq.s32.totalorder %s17, 0
      %p100 = por %p98, %p99
      %p101 = scmp.ne.s32.totalorder %s93, %s95
      %p102 = scmp.eq.s32.totalorder %s22, 1
      %p103 = por %p101, %p102
      %p104 = scmp.ne.s32.totalorder %s95, %s96
      %p105 = scmp.eq.s32.totalorder %s22, 0
      %p106 = por %p104, %p105
      %p107 = scmp.ne.s32.totalorder %s95, %s96
      %p108 = scmp.eq.s32.totalorder %s23, 1
      %p109 = por %p107, %p108
      %p111 = scmp.ne.s32.totalorder %s96, %s110
      %p112 = scmp.eq.s32.totalorder %s23, 0
      %p113 = por %p111, %p112
      %s115 = sadd.s32 %s114, 1
      %p118 = scmp.eq.s32.totalorder %s17, 1
      %p119 = scmp.ne.s32.totalorder %s114, %s116
      %p120 = scmp.eq.s32.totalorder %s17, 0
      %p121 = por %p119, %p120
      %p122 = scmp.ne.s32.totalorder %s114, %s116
      %p123 = scmp.eq.s32.totalorder %s22, 1
      %p124 = por %p122, %p123
      %p125 = scmp.ne.s32.totalorder %s116, %s117
      %p126 = scmp.eq.s32.totalorder %s22, 0
      %p127 = por %p125, %p126
      %p128 = scmp.ne.s32.totalorder %s116, %s117
      %p129 = scmp.eq.s32.totalorder %s23, 1
      %p130 = por %p128, %p129
      %p132 = scmp.ne.s32.totalorder %s117, %s131
      %p133 = scmp.eq.s32.totalorder %s23, 0
      %p134 = por %p132, %p133
      %s135 = ssub.s32 %s17, %s24
      %p136 = scmp.eq.s32.totalorder %s135, 0
      %s138 = sadd.s32 %s137, 1
      %s139 = scalar_select %p136, %s137, %s138
      %p142 = pneg %p136
      %p143 = scmp.eq.s32.totalorder %s17, 1
      %p144 = por %p142, %p143
      %p145 = scmp.ne.s32.totalorder %s137, %s140
      %p146 = scmp.eq.s32.totalorder %s17, 0
      %p147 = por %p145, %p146
      %p148 = scmp.ne.s32.totalorder %s137, %s140
      %p149 = scmp.eq.s32.totalorder %s22, 1
      %p150 = por %p148, %p149
      %p151 = scmp.ne.s32.totalorder %s140, %s141
      %p152 = scmp.eq.s32.totalorder %s22, 0
      %p153 = por %p151, %p152
      %p154 = scmp.ne.s32.totalorder %s140, %s141
      %p155 = scmp.eq.s32.totalorder %s23, 1
      %p156 = por %p154, %p155
      %p158 = scmp.ne.s32.totalorder %s141, %s157
      %p159 = scmp.eq.s32.totalorder %s23, 0
      %p160 = por %p158, %p159
      %p161 = scmp.le.s32.totalorder 1, %s17
      %p162 = scmp.lt.s32.totalorder %s17, 3
      %p163 = pnand %p161, %p162
      %p164 = pneg %p163
      // Predicated region
      $region9: #{tpu_custom_call.1} parent=5 // pred_check
        _
      $region10: #{tpu_custom_call.1} parent=5 // pred_check_branch
        %166 = sbr.rel (%p163) target = $region12
      $region11: #{tpu_custom_call.1} parent=5 // pred_region
        %s167 = ssub.s32 %s17, 1
        // Predicated region
        $region13: #{tpu_custom_call.1} parent=11 // pred_check
          %p168 = pneg %p64
        $region14: #{tpu_custom_call.1} parent=11 // pred_check_branch
          %170 = sbr.rel (%p168) target = $region16
        $region15: #{tpu_custom_call.1} parent=11 // pred_region
          _
        $region16: #{tpu_custom_call.1} parent=11 // pred_fallthru
          _
        // Predicated region
        $region17: #{tpu_custom_call.1} parent=11 // pred_check
          %p171 = pneg %p85
        $region18: #{tpu_custom_call.1} parent=11 // pred_check_branch
          %173 = sbr.rel (%p171) target = $region20
        $region19: #{tpu_custom_call.1} parent=11 // pred_region
          _
        $region20: #{tpu_custom_call.1} parent=11 // pred_fallthru
          _
        // Predicated region
        $region21: #{tpu_custom_call.1} parent=11 // pred_check
          %p174 = pneg %p106
        $region22: #{tpu_custom_call.1} parent=11 // pred_check_branch
          %176 = sbr.rel (%p174) target = $region24
        $region23: #{tpu_custom_call.1} parent=11 // pred_region
          _
        $region24: #{tpu_custom_call.1} parent=11 // pred_fallthru
          _
        // Predicated region
        $region25: #{tpu_custom_call.1} parent=11 // pred_check
          %p177 = pneg %p127
        $region26: #{tpu_custom_call.1} parent=11 // pred_check_branch
          %179 = sbr.rel (%p177) target = $region28
        $region27: #{tpu_custom_call.1} parent=11 // pred_region
          _
        $region28: #{tpu_custom_call.1} parent=11 // pred_fallthru
          _
      $region12: #{tpu_custom_call.1} parent=5 // pred_fallthru
        _
      %p180 = scmp.lt.s32.totalorder %s17, 2
      // Predicated region
      $region29: #{tpu_custom_call.1} parent=5 // pred_check
        %p181 = pneg %p180
      $region30: #{tpu_custom_call.1} parent=5 // pred_check_branch
        %183 = sbr.rel (%p181) target = $region32
      $region31: #{tpu_custom_call.1} parent=5 // pred_region
        // Predicated region
        $region33: #{tpu_custom_call.1} parent=31 // pred_check
          %p184 = pneg %p37
        $region34: #{tpu_custom_call.1} parent=31 // pred_check_branch
          %186 = sbr.rel (%p184) target = $region36
        $region35: #{tpu_custom_call.1} parent=31 // pred_region
          %s187 = sand.u32 %s27, 1
          %s188 = scalar_lea.sflag [#allocation3], %s187
          %s189 = sand.u32 %s27, 1
          %s190 = smul.addr %s189, 64
          %s191 = scalar_lea.vmem [#allocation2], %s190
          %s193 = ssub.s32 1024, 1024
          %194 = vsyncadd %s188, %s193
          %s195 = smul.addr %s17, 8
          %s196 = smul.addr %s195, 128
          %s197 = scalar_lea.hbm %s0, %s196
          %s198 = sshll.u32 %s191, 4
          %s199 = int_to_ptr.vmem [resolvable:$true] %s198
          %204 = dma.hbm_to_vmem [thread:$0]  %s197, 1024, %s199, %s188, 256, 256, 16
        $region36: #{tpu_custom_call.1} parent=31 // pred_fallthru
          _
      $region32: #{tpu_custom_call.1} parent=5 // pred_fallthru
        _
      %p205 = scmp.le.s32.totalorder 1, %s17
      %p206 = scmp.lt.s32.totalorder %s17, 3
      %p207 = pnand %p205, %p206
      %p208 = pneg %p207
      // Predicated region
      $region37: #{tpu_custom_call.1} parent=5 // pred_check
        _
      $region38: #{tpu_custom_call.1} parent=5 // pred_check_branch
        %210 = sbr.rel (%p207) target = $region40
      $region39: #{tpu_custom_call.1} parent=5 // pred_region
        %s211 = ssub.s32 %s17, 1
        %s212 = sand.u32 %s30, 1
        %s213 = scalar_lea.sflag [#allocation3], %s212
        %s214 = sand.u32 %s30, 1
        %s215 = smul.addr %s214, 64
        %s216 = scalar_lea.vmem [#allocation2], %s215
        // Predicated region
        $region41: #{tpu_custom_call.1} parent=39 // pred_check
          %p217 = pneg %p43
        $region42: #{tpu_custom_call.1} parent=39 // pred_check_branch
          %219 = sbr.rel (%p217) target = $region44
        $region43: #{tpu_custom_call.1} parent=39 // pred_region
          %220 = dma.done %s213, 1024
        $region44: #{tpu_custom_call.1} parent=39 // pred_fallthru
          _
        %s221 = sand.u32 %s30, 1
        %s222 = scalar_lea.sflag [#allocation3], %s221
        %s223 = sand.u32 %s30, 1
        %s224 = smul.addr %s223, 64
        %s225 = scalar_lea.vmem [#allocation2], %s224
        %p226 = pneg %p43
        %p227 = pneg %p40
        %p228 = pneg %p64
        %p229 = pneg %p61
        %p230 = pneg %p85
        %p231 = pneg %p82
        %p232 = pneg %p106
        %p233 = pneg %p103
        %p234 = pneg %p127
        %p235 = pneg %p124
        %p236 = pneg %p153
        %p237 = pneg %p150
        %s238 = sand.u32 %s140, 1
        %s239 = scalar_lea.sflag [#allocation4], %s238
        %s240 = sand.u32 %s140, 1
        %s241 = smul.addr %s240, 64
        %s242 = scalar_lea.vmem [#allocation5], %s241
        %v243 = vld [vmem:[%s216] sm:$0xff]
        %v244 = vld [vmem:[%s216 + $0x8] sm:$0xff]
        %v245 = vld [vmem:[%s216 + $0x10] sm:$0xff]
        %v246 = vld [vmem:[%s216 + $0x18] sm:$0xff]
        %v247 = vld [vmem:[%s216 + $0x20] sm:$0xff]
        %v248 = vld [vmem:[%s216 + $0x28] sm:$0xff]
        %v249 = vld [vmem:[%s216 + $0x30] sm:$0xff]
        %v250 = vld [vmem:[%s216 + $0x38] sm:$0xff]
        %v251 = vadd.f32 %v243, %v244
        %252 = vadd.xlane.f32.xlu0 %v251
        %v253 = vpop.xlane.xlu0 %252
        %v254 = vadd.f32 %v245, %v246
        %255 = vadd.xlane.f32.xlu0 %v254
        %v256 = vpop.xlane.xlu0 %255
        %v257 = vadd.f32 %v247, %v248
        %258 = vadd.xlane.f32.xlu0 %v257
        %v259 = vpop.xlane.xlu0 %258
        %v260 = vadd.f32 %v249, %v250
        %261 = vadd.xlane.f32.xlu0 %v260
        %v262 = vpop.xlane.xlu0 %261
        %v263 = vmul.f32 %v253, 0.00390625
        %v264 = vmul.f32 %v256, 0.00390625
        %v265 = vmul.f32 %v259, 0.00390625
        %v266 = vmul.f32 %v262, 0.00390625
        %v267 = vld [vmem:[%s1] sm:$0xff]
        %v268 = vld [vmem:[%s3] sm:$0xff]
        %v269 = vld [vmem:[%s3 + $0x8] sm:$0xff]
        %v270 = vld [vmem:[%s3 + $0x10] sm:$0xff]
        %v271 = vld [vmem:[%s3 + $0x18] sm:$0xff]
        %v272 = vld [vmem:[%s2] sm:$0x1]
        %v277 = vlaneseq
        %v278 = vand.u32 %v277, 127
        %v279 = vlaneseq
        %v280 = vshrl.u32 %v279, 7
        %v281 = vsub.s32 %v278, %v280
        %v282 = vrot.slane %v263, %v281
        %v283 = vadd.s32 %v278, 4294967288
        %v284 = vlaneseq
        %v285 = vshrl.u32 %v284, 7
        %v286 = vsub.s32 %v283, %v285
        %v287 = vrot.slane %v264, %v286
        %vm288 = vcmask 130112
        %v289 = vsel %vm288, %v287, %v282
        %v290 = vadd.s32 %v278, 4294967280
        %v291 = vlaneseq
        %v292 = vshrl.u32 %v291, 7
        %v293 = vsub.s32 %v290, %v292
        %v294 = vrot.slane %v265, %v293
        %vm295 = vcmask 195712
        %v296 = vsel %vm295, %v294, %v289
        %v297 = vadd.s32 %v278, 4294967272
        %v298 = vlaneseq
        %v299 = vshrl.u32 %v298, 7
        %v300 = vsub.s32 %v297, %v299
        %v301 = vrot.slane %v266, %v300
        %vm302 = vcmask 261312
        %v303 = vsel %vm302, %v301, %v296
        %vm304 = vcmask 261120
        %v305 = vsel %vm304, %v303, 0
        %v308 = vsel %vm304, %v267, 0
        %310 = vmatprep.subr.mxu0 0.0
        %311 = vmatpush1.xpose.msra.mxu0 %v308
        %312 = vmatprep.subr.mxu0 0.0
        %313 = vmatpush1.xpose.msra.mxu0 0.0
        %314 = vmatprep.subr.mxu0 0.0
        %315 = vmatpush1.xpose.msra.mxu0 0.0
        %316 = vmatprep.subr.mxu0 0.0
        %317 = vmatpush1.xpose.msra.mxu0 0.0
        %318 = vmatprep.subr.mxu0 0.0
        %319 = vmatpush1.xpose.msra.mxu0 0.0
        %320 = vmatprep.subr.mxu0 0.0
        %321 = vmatpush1.xpose.msra.mxu0 0.0
        %322 = vmatprep.subr.mxu0 0.0
        %323 = vmatpush1.xpose.msra.mxu0 0.0
        %324 = vmatprep.subr.mxu0 0.0
        %325 = vmatpush1.xpose.msra.mxu0 0.0
        %326 = vmatprep.subr.mxu0 0.0
        %327 = vmatpush1.xpose.msra.mxu0 0.0
        %328 = vmatprep.subr.mxu0 0.0
        %329 = vmatpush1.xpose.msra.mxu0 0.0
        %330 = vmatprep.subr.mxu0 0.0
        %331 = vmatpush1.xpose.msra.mxu0 0.0
        %332 = vmatprep.subr.mxu0 0.0
        %333 = vmatpush1.xpose.msra.mxu0 0.0
        %334 = vmatprep.subr.mxu0 0.0
        %335 = vmatpush1.xpose.msra.mxu0 0.0
        %336 = vmatprep.subr.mxu0 0.0
        %337 = vmatpush1.xpose.msra.mxu0 0.0
        %338 = vmatprep.subr.mxu0 0.0
        %339 = vmatpush1.xpose.msra.mxu0 0.0
        %340 = vmatprep.subr.mxu0 0.0
        %341 = vmatpush1.xpose.msra.mxu0 0.0
        %342 = vmatprep.subr.mxu0 0.0
        %343 = vmatpush1.xpose.msra.mxu0 0.0
        %344 = vmatprep.subr.mxu0 0.0
        %345 = vmatpush1.xpose.msra.mxu0 0.0
        %346 = vmatprep.subr.mxu0 0.0
        %347 = vmatpush1.xpose.msra.mxu0 0.0
        %348 = vmatprep.subr.mxu0 0.0
        %349 = vmatpush1.xpose.msra.mxu0 0.0
        %350 = vmatprep.subr.mxu0 0.0
        %351 = vmatpush1.xpose.msra.mxu0 0.0
        %352 = vmatprep.subr.mxu0 0.0
        %353 = vmatpush1.xpose.msra.mxu0 0.0
        %354 = vmatprep.subr.mxu0 0.0
        %355 = vmatpush1.xpose.msra.mxu0 0.0
        %356 = vmatprep.subr.mxu0 0.0
        %357 = vmatpush1.xpose.msra.mxu0 0.0
        %358 = vmatprep.subr.mxu0 0.0
        %359 = vmatpush1.xpose.msra.mxu0 0.0
        %360 = vmatprep.subr.mxu0 0.0
        %361 = vmatpush1.xpose.msra.mxu0 0.0
        %362 = vmatprep.subr.mxu0 0.0
        %363 = vmatpush1.xpose.msra.mxu0 0.0
        %364 = vmatprep.subr.mxu0 0.0
        %365 = vmatpush1.xpose.msra.mxu0 0.0
        %366 = vmatprep.subr.mxu0 0.0
        %367 = vmatpush1.xpose.msra.mxu0 0.0
        %368 = vmatprep.subr.mxu0 0.0
        %369 = vmatpush1.xpose.msra.mxu0 0.0
        %370 = vmatprep.subr.mxu0 0.0
        %371 = vmatpush1.xpose.msra.mxu0 0.0
        %372 = vmatprep.subr.mxu0 0.0
        %373 = vmatpush1.xpose.msra.mxu0 0.0
        %374 = vmatprep.mubr.f32.mxu0 0.0
        %375 = vmatmul.mubr.f32.gmra.mrb[0].mxu0 %v305
        %v376 = vpop.f32.mrb[0].mxu0
        %v377 = vadd.f32 %v272, %v376
        %v378 = vpop.f32.mrb[0].mxu0
        %379 = vdwg.mxu0
        %v380 = vxor.u32 %v377, 2147483648
        %v381 = vmul.f32 %v380, 1.442695
        %v382 = vpow.pop %v381
        %v383 = vadd.f32 %v382, 1.0
        %v384 = vrcp.pop %v383
        %v385 = vmul.f32 1.0, %v384
        %v386 = vmul.f32 %v377, %v385
        %v387 = vld [vmem:[%s4] sm:$0x1]
        %vm388 = vcmask 64512
        %v390 = vsel %vm388, %v386, 0
        %v393 = vsel %vm388, %v268, 0
        %v396 = vsel %vm388, %v269, 0
        %v399 = vsel %vm388, %v270, 0
        %v402 = vsel %vm388, %v271, 0
        %404 = vmatprep.subr.mxu0 0.0
        %405 = vmatpush1.xpose.msra.mxu0 %v393
        %406 = vmatprep.subr.mxu0 0.0
        %407 = vmatpush1.xpose.msra.mxu0 %v396
        %408 = vmatprep.subr.mxu0 0.0
        %409 = vmatpush1.xpose.msra.mxu0 %v399
        %410 = vmatprep.subr.mxu0 0.0
        %411 = vmatpush1.xpose.msra.mxu0 %v402
        %412 = vmatprep.subr.mxu0 0.0
        %413 = vmatpush1.xpose.msra.mxu0 0.0
        %414 = vmatprep.subr.mxu0 0.0
        %415 = vmatpush1.xpose.msra.mxu0 0.0
        %416 = vmatprep.subr.mxu0 0.0
        %417 = vmatpush1.xpose.msra.mxu0 0.0
        %418 = vmatprep.subr.mxu0 0.0
        %419 = vmatpush1.xpose.msra.mxu0 0.0
        %420 = vmatprep.subr.mxu0 0.0
        %421 = vmatpush1.xpose.msra.mxu0 0.0
        %422 = vmatprep.subr.mxu0 0.0
        %423 = vmatpush1.xpose.msra.mxu0 0.0
        %424 = vmatprep.subr.mxu0 0.0
        %425 = vmatpush1.xpose.msra.mxu0 0.0
        %426 = vmatprep.subr.mxu0 0.0
        %427 = vmatpush1.xpose.msra.mxu0 0.0
        %428 = vmatprep.subr.mxu0 0.0
        %429 = vmatpush1.xpose.msra.mxu0 0.0
        %430 = vmatprep.subr.mxu0 0.0
        %431 = vmatpush1.xpose.msra.mxu0 0.0
        %432 = vmatprep.subr.mxu0 0.0
        %433 = vmatpush1.xpose.msra.mxu0 0.0
        %434 = vmatprep.subr.mxu0 0.0
        %435 = vmatpush1.xpose.msra.mxu0 0.0
        %436 = vmatprep.subr.mxu0 0.0
        %437 = vmatpush1.xpose.msra.mxu0 0.0
        %438 = vmatprep.subr.mxu0 0.0
        %439 = vmatpush1.xpose.msra.mxu0 0.0
        %440 = vmatprep.subr.mxu0 0.0
        %441 = vmatpush1.xpose.msra.mxu0 0.0
        %442 = vmatprep.subr.mxu0 0.0
        %443 = vmatpush1.xpose.msra.mxu0 0.0
        %444 = vmatprep.subr.mxu0 0.0
        %445 = vmatpush1.xpose.msra.mxu0 0.0
        %446 = vmatprep.subr.mxu0 0.0
        %447 = vmatpush1.xpose.msra.mxu0 0.0
        %448 = vmatprep.subr.mxu0 0.0
        %449 = vmatpush1.xpose.msra.mxu0 0.0
        %450 = vmatprep.subr.mxu0 0.0
        %451 = vmatpush1.xpose.msra.mxu0 0.0
        %452 = vmatprep.subr.mxu0 0.0
        %453 = vmatpush1.xpose.msra.mxu0 0.0
        %454 = vmatprep.subr.mxu0 0.0
        %455 = vmatpush1.xpose.msra.mxu0 0.0
        %456 = vmatprep.subr.mxu0 0.0
        %457 = vmatpush1.xpose.msra.mxu0 0.0
        %458 = vmatprep.subr.mxu0 0.0
        %459 = vmatpush1.xpose.msra.mxu0 0.0
        %460 = vmatprep.subr.mxu0 0.0
        %461 = vmatpush1.xpose.msra.mxu0 0.0
        %462 = vmatprep.subr.mxu0 0.0
        %463 = vmatpush1.xpose.msra.mxu0 0.0
        %464 = vmatprep.subr.mxu0 0.0
        %465 = vmatpush1.xpose.msra.mxu0 0.0
        %466 = vmatprep.subr.mxu0 0.0
        %467 = vmatpush1.xpose.msra.mxu0 0.0
        %468 = vmatprep.mubr.f32.mxu0 0.0
        %469 = vmatmul.mubr.f32.gmra.mrb[0].mxu0 %v390
        %v470 = vpop.f32.mrb[0].mxu0
        %v471 = vadd.f32 %v387, %v470
        %v472 = vpop.f32.mrb[0].mxu0
        %473 = vdwg.mxu0
        %v474 = vxor.u32 %v471, 2147483648
        %v475 = vmul.f32 %v474, 1.442695
        %v476 = vpow.pop %v475
        %v477 = vadd.f32 %v476, 1.0
        %v478 = vrcp.pop %v477
        %v479 = vmul.f32 1.0, %v478
        %v480 = vlaneseq
        %v481 = vshrl.u32 %v480, 7
        %v482 = vsub.s32 0, %v481
        %v483 = vrot.slane %v479, %v482
        %485 = vbcast.lane.b32.xlu0 %v483, 256
        %v486 = vpop.permute.xlu0 %485
        %s488 = sor.u32 256, 8
        %489 = vbcast.lane.b32.xlu0 %v483, %s488
        %v490 = vpop.permute.xlu0 %489
        %s492 = sor.u32 256, 16
        %493 = vbcast.lane.b32.xlu0 %v483, %s492
        %v494 = vpop.permute.xlu0 %493
        %s496 = sor.u32 256, 24
        %497 = vbcast.lane.b32.xlu0 %v483, %s496
        %v498 = vpop.permute.xlu0 %497
        %v499 = vmul.f32 %v243, %v486
        %v500 = vmul.f32 %v244, %v486
        %v501 = vmul.f32 %v245, %v490
        %v502 = vmul.f32 %v246, %v490
        %v503 = vmul.f32 %v247, %v494
        %v504 = vmul.f32 %v248, %v494
        %v505 = vmul.f32 %v249, %v498
        %v506 = vmul.f32 %v250, %v498
        %507 = vst [vmem:[%s242] sm:$0xff] %v499
        %508 = vst [vmem:[%s242 + $0x8] sm:$0xff] %v500
        %509 = vst [vmem:[%s242 + $0x10] sm:$0xff] %v501
        %510 = vst [vmem:[%s242 + $0x18] sm:$0xff] %v502
        %511 = vst [vmem:[%s242 + $0x20] sm:$0xff] %v503
        %512 = vst [vmem:[%s242 + $0x28] sm:$0xff] %v504
        %513 = vst [vmem:[%s242 + $0x30] sm:$0xff] %v505
        %514 = vst [vmem:[%s242 + $0x38] sm:$0xff] %v506
        %s515 = sand.u32 %s140, 1
        %s516 = scalar_lea.sflag [#allocation4], %s515
        %s517 = sand.u32 %s140, 1
        %s518 = smul.addr %s517, 64
        %s519 = scalar_lea.vmem [#allocation5], %s518
        // Predicated region
        $region45: #{tpu_custom_call.1} parent=39 // pred_check
          %p520 = pneg %p150
        $region46: #{tpu_custom_call.1} parent=39 // pred_check_branch
          %522 = sbr.rel (%p520) target = $region48
        $region47: #{tpu_custom_call.1} parent=39 // pred_region
          %s524 = ssub.s32 1024, 1024
          %525 = vsyncadd %s516, %s524
          %s526 = smul.addr %s22, 8
          %s527 = smul.addr %s526, 128
          %s528 = scalar_lea.hbm %s5, %s527
          %s529 = sshll.u32 %s519, 4
          %s530 = int_to_ptr.vmem [resolvable:$true] %s529
          %535 = dma.vmem_to_hbm [thread:$0]  %s530, 1024, %s528, %s516, 256, 256, 16
        $region48: #{tpu_custom_call.1} parent=39 // pred_fallthru
          _
      $region40: #{tpu_custom_call.1} parent=5 // pred_fallthru
        _
      %p536 = scmp.le.s32.totalorder 2, %s17
      // Predicated region
      $region49: #{tpu_custom_call.1} parent=5 // pred_check
        %p537 = pneg %p536
      $region50: #{tpu_custom_call.1} parent=5 // pred_check_branch
        %539 = sbr.rel (%p537) target = $region52
      $region51: #{tpu_custom_call.1} parent=5 // pred_region
        %s540 = ssub.s32 %s17, 2
        // Predicated region
        $region53: #{tpu_custom_call.1} parent=51 // pred_check
          %p541 = pneg %p156
        $region54: #{tpu_custom_call.1} parent=51 // pred_check_branch
          %543 = sbr.rel (%p541) target = $region56
        $region55: #{tpu_custom_call.1} parent=51 // pred_region
          %s544 = sand.u32 %s141, 1
          %s545 = scalar_lea.sflag [#allocation4], %s544
          %s546 = sand.u32 %s141, 1
          %s547 = smul.addr %s546, 64
          %s548 = scalar_lea.vmem [#allocation5], %s547
          %549 = dma.done %s545, 1024
        $region56: #{tpu_custom_call.1} parent=51 // pred_fallthru
          _
      $region52: #{tpu_custom_call.1} parent=5 // pred_fallthru
        _
    $region6: #{tpu_custom_call.1} parent=1 // loop_footer
      %s21 = sadd.s32 1, %s17
    $region7: #{tpu_custom_call.1} parent=1 // loop_footer_branch
      %16 = sbr.rel target = $region3
    $region8: #{tpu_custom_call.1} parent=1 // loop_exit
      _
    %550 = vsyncpa [#allocation3], 1
    %s551 = scalar_lea.sflag [#allocation3], 1
    %552 = vsyncpa %s551, 1
    %553 = vsyncpa [#allocation4], 1
    %s554 = scalar_lea.sflag [#allocation4], 1
    %555 = vsyncpa %s554, 1

</llo_original>
